<compile_context>
chip_gen: v6e
topology: v6e:2x2x1
jax: 0.10.0
libtpu: 0.0.40
codegen_flags: <defaults>
</compile_context>

<pallas_src>
import jax
import jax.numpy as jnp
from jax.experimental import pallas as pl
from jax.experimental.pallas import tpu as pltpu

# ----------------------------- configuration -------------------------------
C = 3
IMG_SIZE = 16

# transform1: ImageNet normalize (deterministic stand-in for random aug #1)
MEAN1 = (0.485, 0.456, 0.406)
STD1 = (0.229, 0.224, 0.225)
# transform2: 0.5/0.5 normalize (deterministic stand-in for random aug #2)
MEAN2 = (0.5, 0.5, 0.5)
STD2 = (0.5, 0.5, 0.5)

# Working-set budget per grid step: 3 tensors (x, out1, out2) x 2 pipeline buffers.
# 12 MiB keeps us safely under v5e's 16 MiB scoped-VMEM default; v6e/v7x have more headroom.
_VMEM_BUDGET_BYTES = 12 * 1024 * 1024
_MAX_BLOCK_ROWS = 512


# ------------------------------- kernel ------------------------------------
def _make_kernel(c, hw):
    """Build a kernel with per-channel affine constants baked in as scalars."""
    s1 = tuple(float(1.0 / s) for s in STD1)
    b1 = tuple(float(-m / s) for m, s in zip(MEAN1, STD1))
    s2 = tuple(float(1.0 / s) for s in STD2)
    b2 = tuple(float(-m / s) for m, s in zip(MEAN2, STD2))

    def kernel(x_ref, o1_ref, o2_ref):
        # x_ref / o*_ref: (block_b, c*hw) float32, lane-dense flat images.
        # Static per-channel slices (hw is a multiple of 128 for the target shape),
        # each element read once and written once per output -> 1 vmul + 1 vadd per store.
        for ci in range(c):
            lo = ci * hw
            hi = lo + hw
            xc = x_ref[:, lo:hi]
            o1_ref[:, lo:hi] = (xc * s1[ci] + b1[ci]).astype(o1_ref.dtype)
            o2_ref[:, lo:hi] = (xc * s2[ci] + b2[ci]).astype(o2_ref.dtype)

    return kernel


# ------------------------------ helpers -------------------------------------
def _choose_block_b(B, CHW, itemsize=4):
    """Largest batch block that fits the VMEM budget, preferring exact divisors of B."""
    rows_vmem = max(8, _VMEM_BUDGET_BYTES // (6 * CHW * itemsize))
    max_rows = min(_MAX_BLOCK_ROWS, rows_vmem)
    if B <= max_rows:
        return B  # single grid step; block dim == full array dim, no padding needed
    # Largest multiple-of-8 divisor of B that fits -> no padding, no output slice.
    start = (max_rows // 8) * 8
    for bb in range(start, 7, -8):
        if B % bb == 0:
            return bb
    return start  # no clean divisor: caller pads (rare fallback)


# ------------------------------- wrapper ------------------------------------
def sleep_collate(images, labels, fnames=None, *, block_b=None, out_dtype=jnp.float32):
    """images: (B, C, H, W) float32 in [0,1] (ToTensor already applied).
       labels: (B,) integer labels.
       fnames: optional list of strings, passed through unchanged.
    Returns ((batch1, batch2), labels, fnames) matching SleepCollateFunction.forward."""
    B, c, H, W = images.shape
    HW = H * W
    CHW = c * HW

    # Lane-dense flat layout (contiguous reshape; no data movement).
    x = images.reshape(B, CHW).astype(jnp.float32)

    if block_b is None:
        block_b = _choose_block_b(B, CHW)
    block_b = int(block_b)

    n_blocks = pl.cdiv(B, block_b)
    B_pad = n_blocks * block_b
    padded = B_pad != B
    if padded:
        # TODO(synk): fallback only; costs an extra HBM pass for the pad + slice. Hit only when
        #             B has no multiple-of-8 divisor that fits the VMEM budget.
        x = jnp.pad(x, ((0, B_pad - B), (0, 0)))

    kernel = _make_kernel(c, HW)

    grid_spec = pltpu.PrefetchScalarGridSpec(
        num_scalar_prefetch=0,
        grid=(n_blocks,),
        in_specs=[
            pl.BlockSpec((block_b, CHW), lambda b: (b, 0)),
        ],
        out_specs=[
            pl.BlockSpec((block_b, CHW), lambda b: (b, 0)),
            pl.BlockSpec((block_b, CHW), lambda b: (b, 0)),
        ],
    )

    out1, out2 = pl.pallas_call(
        kernel,
        out_shape=(
            jax.ShapeDtypeStruct((B_pad, CHW), out_dtype),
            jax.ShapeDtypeStruct((B_pad, CHW), out_dtype),
        ),
        grid_spec=grid_spec,
        compiler_params=pltpu.CompilerParams(
            dimension_semantics=("parallel",),
            vmem_limit_bytes=32 * 1024 * 1024,
        ),
    )(x)

    if padded:
        out1 = out1[:B]
        out2 = out2[:B]

    # torch.stack(imgs_a/imgs_b): plain reshape back to NCHW (no copy).
    batch1 = out1.reshape(B, c, H, W)
    batch2 = out2.reshape(B, c, H, W)

    # torch.LongTensor -> int32 under default JAX (x64 disabled).
    labels_out = labels.astype(jnp.int32)

    return (batch1, batch2), labels_out, fnames


# --------------------------------- main --------------------------------------
if __name__ == "__main__":
    key = jax.random.PRNGKey(0)
    B = 16
    images = jax.random.uniform(key, (B, C, IMG_SIZE, IMG_SIZE), dtype=jnp.float32)
    labels = jnp.arange(B, dtype=jnp.int32) % 5
    fnames = [f"img_{i}.png" for i in range(B)]

    (batch1, batch2), labels_out, fnames_out = sleep_collate(images, labels, fnames)
    jax.block_until_ready((batch1, batch2, labels_out))

    # pure-JAX reference
    m1 = jnp.array(MEAN1).reshape(1, C, 1, 1)
    s1 = jnp.array(STD1).reshape(1, C, 1, 1)
    m2 = jnp.array(MEAN2).reshape(1, C, 1, 1)
    s2 = jnp.array(STD2).reshape(1, C, 1, 1)
    ref1 = (images - m1) / s1
    ref2 = (images - m2) / s2

    assert batch1.shape == (B, C, IMG_SIZE, IMG_SIZE)
    assert batch2.shape == (B, C, IMG_SIZE, IMG_SIZE)
    assert labels_out.shape == (B,)
    assert jnp.allclose(batch1, ref1, atol=1e-5)
    assert jnp.allclose(batch2, ref2, atol=1e-5)
    assert jnp.array_equal(labels_out, labels)
    assert fnames_out == fnames

    print("KERNEL_OK")
</pallas_src>

<mosaic_0001>
module attributes {stable_mosaic.version = 11 : i64} {
  func.func @kernel(%arg0: i32, %arg1: memref<16x768xf32, #tpu.memory_space<vmem>>, %arg2: memref<16x768xf32, #tpu.memory_space<vmem>>, %arg3: memref<16x768xf32, #tpu.memory_space<vmem>>) attributes {dimension_semantics = [#tpu.dimension_semantics<parallel>], iteration_bounds = array<i64: 1>, scalar_prefetch = 0 : i64, scratch_operands = 0 : i64, tpu.core_type = #tpu.core_type<tc>, window_params = [{transform_indices = @transform_0, window_bounds = array<i64: 16, 768>}, {transform_indices = @transform_1, window_bounds = array<i64: 16, 768>}, {transform_indices = @transform_2, window_bounds = array<i64: 16, 768>}]} {
    %c0 = arith.constant 0 : index
    %c0_0 = arith.constant 0 : index
    %0 = vector.load %arg1[%c0, %c0_0] : memref<16x768xf32, #tpu.memory_space<vmem>>, vector<16x256xf32>
    %cst = arith.constant 4.36681223 : f32
    %1 = vector.broadcast %cst : f32 to vector<16x256xf32>
    %2 = arith.mulf %0, %1 : vector<16x256xf32>
    %cst_1 = arith.constant -2.11790395 : f32
    %3 = vector.broadcast %cst_1 : f32 to vector<16x256xf32>
    %4 = arith.addf %2, %3 : vector<16x256xf32>
    %c0_2 = arith.constant 0 : index
    %c0_3 = arith.constant 0 : index
    %5 = vector.load %arg2[%c0_2, %c0_3] : memref<16x768xf32, #tpu.memory_space<vmem>>, vector<16x256xf32>
    tpu.vector_store %arg2[%c0_2, %c0_3], %4 {strides = array<i32>} : memref<16x768xf32, #tpu.memory_space<vmem>>, vector<16x256xf32>,
    %cst_4 = arith.constant 2.000000e+00 : f32
    %6 = vector.broadcast %cst_4 : f32 to vector<16x256xf32>
    %7 = arith.mulf %0, %6 : vector<16x256xf32>
    %cst_5 = arith.constant -1.000000e+00 : f32
    %8 = vector.broadcast %cst_5 : f32 to vector<16x256xf32>
    %9 = arith.addf %7, %8 : vector<16x256xf32>
    %c0_6 = arith.constant 0 : index
    %c0_7 = arith.constant 0 : index
    %10 = vector.load %arg3[%c0_6, %c0_7] : memref<16x768xf32, #tpu.memory_space<vmem>>, vector<16x256xf32>
    tpu.vector_store %arg3[%c0_6, %c0_7], %9 {strides = array<i32>} : memref<16x768xf32, #tpu.memory_space<vmem>>, vector<16x256xf32>,
    %c0_8 = arith.constant 0 : index
    %c256 = arith.constant 256 : index
    %11 = vector.load %arg1[%c0_8, %c256] : memref<16x768xf32, #tpu.memory_space<vmem>>, vector<16x256xf32>
    %cst_9 = arith.constant 4.46428585 : f32
    %12 = vector.broadcast %cst_9 : f32 to vector<16x256xf32>
    %13 = arith.mulf %11, %12 : vector<16x256xf32>
    %cst_10 = arith.constant -2.03571439 : f32
    %14 = vector.broadcast %cst_10 : f32 to vector<16x256xf32>
    %15 = arith.addf %13, %14 : vector<16x256xf32>
    %c0_11 = arith.constant 0 : index
    %c256_12 = arith.constant 256 : index
    %16 = vector.load %arg2[%c0_11, %c256_12] : memref<16x768xf32, #tpu.memory_space<vmem>>, vector<16x256xf32>
    tpu.vector_store %arg2[%c0_11, %c256_12], %15 {strides = array<i32>} : memref<16x768xf32, #tpu.memory_space<vmem>>, vector<16x256xf32>,
    %cst_13 = arith.constant 2.000000e+00 : f32
    %17 = vector.broadcast %cst_13 : f32 to vector<16x256xf32>
    %18 = arith.mulf %11, %17 : vector<16x256xf32>
    %cst_14 = arith.constant -1.000000e+00 : f32
    %19 = vector.broadcast %cst_14 : f32 to vector<16x256xf32>
    %20 = arith.addf %18, %19 : vector<16x256xf32>
    %c0_15 = arith.constant 0 : index
    %c256_16 = arith.constant 256 : index
    %21 = vector.load %arg3[%c0_15, %c256_16] : memref<16x768xf32, #tpu.memory_space<vmem>>, vector<16x256xf32>
    tpu.vector_store %arg3[%c0_15, %c256_16], %20 {strides = array<i32>} : memref<16x768xf32, #tpu.memory_space<vmem>>, vector<16x256xf32>,
    %c0_17 = arith.constant 0 : index
    %c512 = arith.constant 512 : index
    %22 = vector.load %arg1[%c0_17, %c512] : memref<16x768xf32, #tpu.memory_space<vmem>>, vector<16x256xf32>
    %cst_18 = arith.constant 4.44444466 : f32
    %23 = vector.broadcast %cst_18 : f32 to vector<16x256xf32>
    %24 = arith.mulf %22, %23 : vector<16x256xf32>
    %cst_19 = arith.constant -1.80444443 : f32
    %25 = vector.broadcast %cst_19 : f32 to vector<16x256xf32>
    %26 = arith.addf %24, %25 : vector<16x256xf32>
    %c0_20 = arith.constant 0 : index
    %c512_21 = arith.constant 512 : index
    %27 = vector.load %arg2[%c0_20, %c512_21] : memref<16x768xf32, #tpu.memory_space<vmem>>, vector<16x256xf32>
    tpu.vector_store %arg2[%c0_20, %c512_21], %26 {strides = array<i32>} : memref<16x768xf32, #tpu.memory_space<vmem>>, vector<16x256xf32>,
    %cst_22 = arith.constant 2.000000e+00 : f32
    %28 = vector.broadcast %cst_22 : f32 to vector<16x256xf32>
    %29 = arith.mulf %22, %28 : vector<16x256xf32>
    %cst_23 = arith.constant -1.000000e+00 : f32
    %30 = vector.broadcast %cst_23 : f32 to vector<16x256xf32>
    %31 = arith.addf %29, %30 : vector<16x256xf32>
    %c0_24 = arith.constant 0 : index
    %c512_25 = arith.constant 512 : index
    %32 = vector.load %arg3[%c0_24, %c512_25] : memref<16x768xf32, #tpu.memory_space<vmem>>, vector<16x256xf32>
    tpu.vector_store %arg3[%c0_24, %c512_25], %31 {strides = array<i32>} : memref<16x768xf32, #tpu.memory_space<vmem>>, vector<16x256xf32>,
    return
  }
  func.func @transform_0(%arg0: i32) -> (i32, i32) {
    %c0_i32 = arith.constant 0 : i32
    %c0_i32_0 = arith.constant 0 : i32
    return %arg0, %c0_i32 : i32, i32
  }
  func.func @transform_1(%arg0: i32) -> (i32, i32) {
    %c0_i32 = arith.constant 0 : i32
    %c0_i32_0 = arith.constant 0 : i32
    return %arg0, %c0_i32 : i32, i32
  }
  func.func @transform_2(%arg0: i32) -> (i32, i32) {
    %c0_i32 = arith.constant 0 : i32
    %c0_i32_0 = arith.constant 0 : i32
    return %arg0, %c0_i32 : i32, i32
  }
}

</mosaic_0001>

<llo_original>
// kernel: tpu_custom_call.1
$region0: #{tpu_custom_call.1}
  #allocation0 [shape = 'u32[]', space=smem, size = 0x4, offset = 0x4, fixed_abs, tag = 'smem constant byte address 0x4 - core index']
  #allocation1 [shape = 'u32[144,128]{1,0:T(1,128)}', space=vmem, size = 0x12000, scoped, tag = 'internal scratch']
  %s0 = inlined_call_operand.hbm [shape: f32[16,768], index: 0, kind: input, shape index: {}]
  %s1 = inlined_call_operand.hbm [shape: f32[16,768], index: 1, kind: output, shape index: {0}]
  %s2 = inlined_call_operand.hbm [shape: f32[16,768], index: 2, kind: output, shape index: {1}]
  %3 = xla_tuple %s1, %s2
  %s4 = sld [smem:[#allocation0]]
  $region26: #{tpu_custom_call.1} parent=0
    _
  %s6 = ssub.s32 1, %s4
  %s7 = scalar_select 0, %s6, %s4
  $region1: #{tpu_custom_call.1} parent=0
    #allocation2 [shape = 'u8[49152]{0}', space=vmem, size = 0xc000, scoped, tag = 'input window, operand 0, single buffered']
    #allocation3 [shape = 's32[1]{0}', space=sflag, size = 0x4, scoped, tag = 'scoped memory for tpu_custom_call.1']
    #allocation4 [shape = 's32[1]{0}', space=sflag, size = 0x4, scoped, tag = 'scoped memory for tpu_custom_call.1']
    #allocation5 [shape = 'u8[49152]{0}', space=vmem, size = 0xc000, scoped, tag = 'output window, operand 0, single buffered']
    #allocation6 [shape = 'u8[49152]{0}', space=vmem, size = 0xc000, scoped, tag = 'output window, operand 1, single buffered']
    #allocation7 [shape = 's32[1]{0}', space=sflag, size = 0x4, scoped, tag = 'scoped memory for tpu_custom_call.1']
    %8 = vsyncpa [#allocation3], 0
    %9 = vsyncpa [#allocation4], 0
    %10 = vsyncpa [#allocation7], 0
    // Predicated region
    $region2: #{tpu_custom_call.1} parent=1 // pred_check
      _
    $region3: #{tpu_custom_call.1} parent=1 // pred_check_branch
      %12 = sbr.rel (0) target = $region5
    $region4: #{tpu_custom_call.1} parent=1 // pred_region
      %s14 = ssub.s32 1536, 1536
      %15 = vsyncadd [#allocation3], %s14
      %s16 = sshll.u32 [#allocation2], 4
      %s17 = int_to_ptr.vmem [resolvable:$true] %s16
      %22 = dma.hbm_to_vmem [thread:$0]  %s0, 1536, %s17, [#allocation3], 768, 768, 48
    $region5: #{tpu_custom_call.1} parent=1 // pred_fallthru
      _
    // Predicated region
    $region6: #{tpu_custom_call.1} parent=1 // pred_check
      _
    $region7: #{tpu_custom_call.1} parent=1 // pred_check_branch
      %24 = sbr.rel (0) target = $region9
    $region8: #{tpu_custom_call.1} parent=1 // pred_region
      %25 = dma.done [#allocation3], 1536
    $region9: #{tpu_custom_call.1} parent=1 // pred_fallthru
      _
    %v26 = vld [vmem:[#allocation2] sm:$0xff]
    %v27 = vld [vmem:[#allocation2 + $0x8] sm:$0xff]
    %v28 = vld [vmem:[#allocation2 + $0x30] sm:$0xff]
    %v29 = vld [vmem:[#allocation2 + $0x38] sm:$0xff]
    %v30 = vmul.f32 %v26, 4.366812
    %v31 = vmul.f32 %v27, 4.366812
    %v32 = vmul.f32 %v28, 4.366812
    %v33 = vmul.f32 %v29, 4.366812
    %v34 = vadd.f32 %v30, -2.117904
    %v35 = vadd.f32 %v31, -2.117904
    %v36 = vadd.f32 %v32, -2.117904
    %v37 = vadd.f32 %v33, -2.117904
    %38 = vst [vmem:[#allocation5] sm:$0xff] %v34
    %39 = vst [vmem:[#allocation5 + $0x8] sm:$0xff] %v35
    %40 = vst [vmem:[#allocation5 + $0x30] sm:$0xff] %v36
    %41 = vst [vmem:[#allocation5 + $0x38] sm:$0xff] %v37
    %v42 = vmul.f32 %v26, 2.0
    %v43 = vmul.f32 %v27, 2.0
    %v44 = vmul.f32 %v28, 2.0
    %v45 = vmul.f32 %v29, 2.0
    %v46 = vadd.f32 %v42, -1.0
    %v47 = vadd.f32 %v43, -1.0
    %v48 = vadd.f32 %v44, -1.0
    %v49 = vadd.f32 %v45, -1.0
    %50 = vst [vmem:[#allocation6] sm:$0xff] %v46
    %51 = vst [vmem:[#allocation6 + $0x8] sm:$0xff] %v47
    %52 = vst [vmem:[#allocation6 + $0x30] sm:$0xff] %v48
    %53 = vst [vmem:[#allocation6 + $0x38] sm:$0xff] %v49
    %v54 = vld [vmem:[#allocation2 + $0x10] sm:$0xff]
    %v55 = vld [vmem:[#allocation2 + $0x18] sm:$0xff]
    %v56 = vld [vmem:[#allocation2 + $0x40] sm:$0xff]
    %v57 = vld [vmem:[#allocation2 + $0x48] sm:$0xff]
    %v58 = vmul.f32 %v54, 4.464286
    %v59 = vmul.f32 %v55, 4.464286
    %v60 = vmul.f32 %v56, 4.464286
    %v61 = vmul.f32 %v57, 4.464286
    %v62 = vadd.f32 %v58, -2.0357144
    %v63 = vadd.f32 %v59, -2.0357144
    %v64 = vadd.f32 %v60, -2.0357144
    %v65 = vadd.f32 %v61, -2.0357144
    %66 = vst [vmem:[#allocation5 + $0x10] sm:$0xff] %v62
    %67 = vst [vmem:[#allocation5 + $0x18] sm:$0xff] %v63
    %68 = vst [vmem:[#allocation5 + $0x40] sm:$0xff] %v64
    %69 = vst [vmem:[#allocation5 + $0x48] sm:$0xff] %v65
    %v70 = vmul.f32 %v54, 2.0
    %v71 = vmul.f32 %v55, 2.0
    %v72 = vmul.f32 %v56, 2.0
    %v73 = vmul.f32 %v57, 2.0
    %v74 = vadd.f32 %v70, -1.0
    %v75 = vadd.f32 %v71, -1.0
    %v76 = vadd.f32 %v72, -1.0
    %v77 = vadd.f32 %v73, -1.0
    %78 = vst [vmem:[#allocation6 + $0x10] sm:$0xff] %v74
    %79 = vst [vmem:[#allocation6 + $0x18] sm:$0xff] %v75
    %80 = vst [vmem:[#allocation6 + $0x40] sm:$0xff] %v76
    %81 = vst [vmem:[#allocation6 + $0x48] sm:$0xff] %v77
    %v82 = vld [vmem:[#allocation2 + $0x20] sm:$0xff]
    %v83 = vld [vmem:[#allocation2 + $0x28] sm:$0xff]
    %v84 = vld [vmem:[#allocation2 + $0x50] sm:$0xff]
    %v85 = vld [vmem:[#allocation2 + $0x58] sm:$0xff]
    %v86 = vmul.f32 %v82, 4.4444447
    %v87 = vmul.f32 %v83, 4.4444447
    %v88 = vmul.f32 %v84, 4.4444447
    %v89 = vmul.f32 %v85, 4.4444447
    %v90 = vadd.f32 %v86, -1.8044444
    %v91 = vadd.f32 %v87, -1.8044444
    %v92 = vadd.f32 %v88, -1.8044444
    %v93 = vadd.f32 %v89, -1.8044444
    %94 = vst [vmem:[#allocation5 + $0x20] sm:$0xff] %v90
    %95 = vst [vmem:[#allocation5 + $0x28] sm:$0xff] %v91
    %96 = vst [vmem:[#allocation5 + $0x50] sm:$0xff] %v92
    %97 = vst [vmem:[#allocation5 + $0x58] sm:$0xff] %v93
    %v98 = vmul.f32 %v82, 2.0
    %v99 = vmul.f32 %v83, 2.0
    %v100 = vmul.f32 %v84, 2.0
    %v101 = vmul.f32 %v85, 2.0
    %v102 = vadd.f32 %v98, -1.0
    %v103 = vadd.f32 %v99, -1.0
    %v104 = vadd.f32 %v100, -1.0
    %v105 = vadd.f32 %v101, -1.0
    %106 = vst [vmem:[#allocation6 + $0x20] sm:$0xff] %v102
    %107 = vst [vmem:[#allocation6 + $0x28] sm:$0xff] %v103
    %108 = vst [vmem:[#allocation6 + $0x50] sm:$0xff] %v104
    %109 = vst [vmem:[#allocation6 + $0x58] sm:$0xff] %v105
    // Predicated region
    $region10: #{tpu_custom_call.1} parent=1 // pred_check
      _
    $region11: #{tpu_custom_call.1} parent=1 // pred_check_branch
      %111 = sbr.rel (0) target = $region13
    $region12: #{tpu_custom_call.1} parent=1 // pred_region
      %s113 = ssub.s32 1536, 1536
      %114 = vsyncadd [#allocation4], %s113
      %s115 = sshll.u32 [#allocation5], 4
      %s116 = int_to_ptr.vmem [resolvable:$true] %s115
      %121 = dma.vmem_to_hbm [thread:$0]  %s116, 1536, %s1, [#allocation4], 768, 768, 48
    $region13: #{tpu_custom_call.1} parent=1 // pred_fallthru
      _
    // Predicated region
    $region14: #{tpu_custom_call.1} parent=1 // pred_check
      _
    $region15: #{tpu_custom_call.1} parent=1 // pred_check_branch
      %123 = sbr.rel (0) target = $region17
    $region16: #{tpu_custom_call.1} parent=1 // pred_region
      %s125 = ssub.s32 1536, 1536
      %126 = vsyncadd [#allocation7], %s125
      %s127 = sshll.u32 [#allocation6], 4
      %s128 = int_to_ptr.vmem [resolvable:$true] %s127
      %133 = dma.vmem_to_hbm [thread:$0]  %s128, 1536, %s2, [#allocation7], 768, 768, 48
    $region17: #{tpu_custom_call.1} parent=1 // pred_fallthru
      _
    // Predicated region
    $region18: #{tpu_custom_call.1} parent=1 // pred_check
      _
    $region19: #{tpu_custom_call.1} parent=1 // pred_check_branch
      %135 = sbr.rel (0) target = $region21
    $region20: #{tpu_custom_call.1} parent=1 // pred_region
      %136 = dma.done [#allocation4], 1536
    $region21: #{tpu_custom_call.1} parent=1 // pred_fallthru
      _
    // Predicated region
    $region22: #{tpu_custom_call.1} parent=1 // pred_check
      _
    $region23: #{tpu_custom_call.1} parent=1 // pred_check_branch
      %138 = sbr.rel (0) target = $region25
    $region24: #{tpu_custom_call.1} parent=1 // pred_region
      %139 = dma.done [#allocation7], 1536
    $region25: #{tpu_custom_call.1} parent=1 // pred_fallthru
      _
    %140 = vsyncpa [#allocation3], 1
    %141 = vsyncpa [#allocation4], 1
    %142 = vsyncpa [#allocation7], 1

</llo_original>
